<compile_context>
chip_gen: v5e
topology: v5e:2x2
jax: 0.10.0
libtpu: 0.0.40
codegen_flags: <defaults>
</compile_context>

<pallas_src>
import jax
import jax.numpy as jnp
from jax import lax
from jax.experimental import pallas as pl
from jax.experimental.pallas import tpu as pltpu


def _round_up(x, m):
    return ((x + m - 1) // m) * m


def actor_kernel(x_ref, w1_ref, b1_ref, w2_ref, b2_ref, w3_ref, b3_ref, o_ref):
    # x_ref: (tile_b, S) bf16 (natural PyTorch row layout, no wrapper transpose)
    # w*:    (out, in)   bf16 (PyTorch nn.Linear layout), VMEM-resident
    # b*:    (out, 1)    f32
    # o_ref: (A, tile_b) f32  -> lane-dense stores (batch on the lane axis)
    x = x_ref[...]
    # Layer 1: W1 @ x^T via dot_general contracting both minor axes (in-kernel
    # transpose on the MXU/XLU path instead of a separate wrapper HBM pass).
    h1 = lax.dot_general(w1_ref[...], x, (((1,), (1,)), ((), ())),
                         preferred_element_type=jnp.float32)
    h1 = jnp.maximum(h1 + b1_ref[...], 0.0).astype(jnp.bfloat16)
    # Layer 2: Linear(64 -> 64) + ReLU
    h2 = jnp.dot(w2_ref[...], h1, preferred_element_type=jnp.float32)
    h2 = jnp.maximum(h2 + b2_ref[...], 0.0).astype(jnp.bfloat16)
    # Layer 3: Linear(64 -> action), no activation
    out = jnp.dot(w3_ref[...], h2, preferred_element_type=jnp.float32)
    o_ref[...] = (out + b3_ref[...]).astype(o_ref.dtype)


def _pick_tile(B):
    """Static (shape-derived) batch tile selection.

    * round_up(B,128) <= 1024 -> single block (grid of 1, no per-step overhead)
    * larger                  -> even count of ~<=2048-wide tiles (v7x 2-TC balance)
    """
    B128 = _round_up(max(B, 1), 128)
    if B128 <= 1024:
        return B128
    n_tiles = 2 * ((B128 + 2 * 2048 - 1) // (2 * 2048))     # even
    return _round_up((B128 + n_tiles - 1) // n_tiles, 128)


def _actor_forward_impl(x, params, tile_b=None):
    """Fused 3-layer MLP forward.

    x:      (B, state_size) float32.
    params: prepared params (see prepare_params): bf16 weights (out, in),
            f32 biases (out, 1).
    Returns (B, action_size) float32.
    """
    w1, b1, w2, b2, w3, b3 = params
    B, S = x.shape
    A = w3.shape[0]

    tb = _pick_tile(B) if tile_b is None else tile_b
    n_tiles = pl.cdiv(B, tb)
    B_pad = n_tiles * tb

    # bf16 operands halve streamed bytes + hit native MXU rate; accumulation and
    # bias/ReLU stay f32 inside the kernel.  Cast + pad fuse into one op under jit.
    x_bf = x.astype(jnp.bfloat16)
    if B_pad != B:
        x_bf = jnp.pad(x_bf, ((0, B_pad - B), (0, 0)))

    const = lambda shape: pl.BlockSpec(shape, lambda i: (0, 0))

    outT = pl.pallas_call(
        actor_kernel,
        out_shape=jax.ShapeDtypeStruct((A, B_pad), jnp.float32),
        grid=(n_tiles,),
        in_specs=[
            pl.BlockSpec((tb, S), lambda i: (i, 0)),        # x tile, natural layout
            const(w1.shape), const(b1.shape),               # weights/biases stay
            const(w2.shape), const(b2.shape),               # VMEM-resident across
            const(w3.shape), const(b3.shape),               # grid iterations
        ],
        out_specs=pl.BlockSpec((A, tb), lambda i: (0, i)),  # lane-dense stores
        compiler_params=pltpu.CompilerParams(
            dimension_semantics=("parallel",),              # v7x: shard tiles over 2 TCs
        ),
    )(x_bf, w1, b1, w2, b2, w3, b3)

    # (A, B) is tiny (A=action_size); slice + transpose fuse under jit.
    return outT[:, :B].T


actor_forward = jax.jit(_actor_forward_impl, static_argnames=("tile_b",))


def prepare_params(params_f32):
    """One-time conversion outside the per-call path: bf16 weights, (out,1) f32 biases."""
    w1, b1, w2, b2, w3, b3 = params_f32
    return (w1.astype(jnp.bfloat16), b1.reshape(-1, 1).astype(jnp.float32),
            w2.astype(jnp.bfloat16), b2.reshape(-1, 1).astype(jnp.float32),
            w3.astype(jnp.bfloat16), b3.reshape(-1, 1).astype(jnp.float32))


def init_linear(key, fan_in, fan_out):
    # PyTorch nn.Linear default init: U(-1/sqrt(fan_in), 1/sqrt(fan_in)),
    # weight layout (out_features, in_features).
    kw, kb = jax.random.split(key)
    bound = 1.0 / jnp.sqrt(fan_in)
    w = jax.random.uniform(kw, (fan_out, fan_in), jnp.float32, -bound, bound)
    b = jax.random.uniform(kb, (fan_out,), jnp.float32, -bound, bound)
    return w, b


def reference_forward(x, params_f32):
    w1, b1, w2, b2, w3, b3 = params_f32
    h1 = jnp.maximum(x @ w1.T + b1, 0.0)
    h2 = jnp.maximum(h1 @ w2.T + b2, 0.0)
    return h2 @ w3.T + b3


if __name__ == "__main__":
    key = jax.random.PRNGKey(0)
    k_x, k_x2, k_x3, k1, k2, k3 = jax.random.split(key, 6)

    state_size = 16
    action_size = 4
    hidden = 64  # fixed by the module definition

    w1, b1 = init_linear(k1, state_size, hidden)
    w2, b2 = init_linear(k2, hidden, hidden)
    w3, b3 = init_linear(k3, hidden, action_size)
    params_f32 = (w1, b1, w2, b2, w3, b3)
    params = prepare_params(params_f32)     # bf16 weights, cast once

    # bf16 operands with f32 accumulation -> relaxed tolerance vs the f32 reference.
    tol = dict(atol=5e-2, rtol=5e-2)

    # Small batch: single 128-wide tile (padding path).
    x = jax.random.normal(k_x, (8, state_size), jnp.float32)
    out = jax.block_until_ready(actor_forward(x, params))
    assert out.shape == (8, action_size)
    assert jnp.allclose(out, reference_forward(x, params_f32), **tol), "mismatch (B=8)"

    # Non-multiple batch: now a single 384-wide tile (was 3 tiles of 128).
    x2 = jax.random.normal(k_x2, (300, state_size), jnp.float32)
    out2 = jax.block_until_ready(actor_forward(x2, params))
    assert out2.shape == (300, action_size)
    assert jnp.allclose(out2, reference_forward(x2, params_f32), **tol), "mismatch (B=300)"

    # Larger batch: even multi-tile grid path (2 tiles of 1280, v7x-balanced).
    x3 = jax.random.normal(k_x3, (2500, state_size), jnp.float32)
    out3 = jax.block_until_ready(actor_forward(x3, params))
    assert out3.shape == (2500, action_size)
    assert jnp.allclose(out3, reference_forward(x3, params_f32), **tol), "mismatch (B=2500)"

    print("KERNEL_OK")
</pallas_src>

<mosaic_0001>
module attributes {stable_mosaic.version = 11 : i64} {
  func.func @actor_kernel(%arg0: i32, %arg1: memref<128x16xbf16, #tpu.memory_space<vmem>>, %arg2: memref<64x16xbf16, #tpu.memory_space<vmem>>, %arg3: memref<64x1xf32, #tpu.memory_space<vmem>>, %arg4: memref<64x64xbf16, #tpu.memory_space<vmem>>, %arg5: memref<64x1xf32, #tpu.memory_space<vmem>>, %arg6: memref<4x64xbf16, #tpu.memory_space<vmem>>, %arg7: memref<4x1xf32, #tpu.memory_space<vmem>>, %arg8: memref<4x128xf32, #tpu.memory_space<vmem>>) attributes {dimension_semantics = [#tpu.dimension_semantics<parallel>], iteration_bounds = array<i64: 1>, scalar_prefetch = 0 : i64, scratch_operands = 0 : i64, tpu.core_type = #tpu.core_type<tc>, window_params = [{transform_indices = @transform_0, window_bounds = array<i64: 128, 16>}, {pipeline_mode = #tpu.pipeline_mode<synchronous>, transform_indices = @transform_1, window_bounds = array<i64: 64, 16>}, {pipeline_mode = #tpu.pipeline_mode<synchronous>, transform_indices = @transform_2, window_bounds = array<i64: 64, 1>}, {pipeline_mode = #tpu.pipeline_mode<synchronous>, transform_indices = @transform_3, window_bounds = array<i64: 64, 64>}, {pipeline_mode = #tpu.pipeline_mode<synchronous>, transform_indices = @transform_4, window_bounds = array<i64: 64, 1>}, {pipeline_mode = #tpu.pipeline_mode<synchronous>, transform_indices = @transform_5, window_bounds = array<i64: 4, 64>}, {pipeline_mode = #tpu.pipeline_mode<synchronous>, transform_indices = @transform_6, window_bounds = array<i64: 4, 1>}, {transform_indices = @transform_7, window_bounds = array<i64: 4, 128>}]} {
    %c0 = arith.constant 0 : index
    %c0_0 = arith.constant 0 : index
    %0 = vector.load %arg1[%c0, %c0_0] : memref<128x16xbf16, #tpu.memory_space<vmem>>, vector<128x16xbf16>
    %c0_1 = arith.constant 0 : index
    %c0_2 = arith.constant 0 : index
    %1 = vector.load %arg2[%c0_1, %c0_2] : memref<64x16xbf16, #tpu.memory_space<vmem>>, vector<64x16xbf16>
    %cst = arith.constant dense<0.000000e+00> : vector<64x128xf32>
    %2 = tpu.matmul %1, %0, %cst {dimension_numbers = #tpu.dot_dimension_numbers<[1], [1], [0], [0], [0, 0, 1, 0], [], []>} : vector<64x16xbf16>, vector<128x16xbf16>, vector<64x128xf32> -> vector<64x128xf32>
    %c0_3 = arith.constant 0 : index
    %c0_4 = arith.constant 0 : index
    %3 = vector.load %arg3[%c0_3, %c0_4] : memref<64x1xf32, #tpu.memory_space<vmem>>, vector<64x1xf32>
    %4 = vector.broadcast %3 : vector<64x1xf32> to vector<64x128xf32>
    %5 = arith.addf %2, %4 : vector<64x128xf32>
    %cst_5 = arith.constant 0.000000e+00 : f32
    %6 = vector.broadcast %cst_5 : f32 to vector<64x128xf32>
    %7 = arith.maximumf %5, %6 : vector<64x128xf32>
    %8 = arith.truncf %7 : vector<64x128xf32> to vector<64x128xbf16>
    %c0_6 = arith.constant 0 : index
    %c0_7 = arith.constant 0 : index
    %9 = vector.load %arg4[%c0_6, %c0_7] : memref<64x64xbf16, #tpu.memory_space<vmem>>, vector<64x64xbf16>
    %cst_8 = arith.constant dense<0.000000e+00> : vector<64x128xf32>
    %10 = tpu.matmul %9, %8, %cst_8 {dimension_numbers = #tpu.dot_dimension_numbers<[1], [0], [0], [1], [0, 0, 1, 1], [], []>} : vector<64x64xbf16>, vector<64x128xbf16>, vector<64x128xf32> -> vector<64x128xf32>
    %c0_9 = arith.constant 0 : index
    %c0_10 = arith.constant 0 : index
    %11 = vector.load %arg5[%c0_9, %c0_10] : memref<64x1xf32, #tpu.memory_space<vmem>>, vector<64x1xf32>
    %12 = vector.broadcast %11 : vector<64x1xf32> to vector<64x128xf32>
    %13 = arith.addf %10, %12 : vector<64x128xf32>
    %cst_11 = arith.constant 0.000000e+00 : f32
    %14 = vector.broadcast %cst_11 : f32 to vector<64x128xf32>
    %15 = arith.maximumf %13, %14 : vector<64x128xf32>
    %16 = arith.truncf %15 : vector<64x128xf32> to vector<64x128xbf16>
    %c0_12 = arith.constant 0 : index
    %c0_13 = arith.constant 0 : index
    %17 = vector.load %arg6[%c0_12, %c0_13] : memref<4x64xbf16, #tpu.memory_space<vmem>>, vector<4x64xbf16>
    %cst_14 = arith.constant dense<0.000000e+00> : vector<4x128xf32>
    %18 = tpu.matmul %17, %16, %cst_14 {dimension_numbers = #tpu.dot_dimension_numbers<[1], [0], [0], [1], [0, 0, 1, 1], [], []>} : vector<4x64xbf16>, vector<64x128xbf16>, vector<4x128xf32> -> vector<4x128xf32>
    %c0_15 = arith.constant 0 : index
    %c0_16 = arith.constant 0 : index
    %19 = vector.load %arg7[%c0_15, %c0_16] : memref<4x1xf32, #tpu.memory_space<vmem>>, vector<4x1xf32>
    %20 = vector.broadcast %19 : vector<4x1xf32> to vector<4x128xf32>
    %21 = arith.addf %18, %20 : vector<4x128xf32>
    %c0_17 = arith.constant 0 : index
    %c0_18 = arith.constant 0 : index
    %22 = vector.load %arg8[%c0_17, %c0_18] : memref<4x128xf32, #tpu.memory_space<vmem>>, vector<4x128xf32>
    tpu.vector_store %arg8[%c0_17, %c0_18], %21 {strides = array<i32>} : memref<4x128xf32, #tpu.memory_space<vmem>>, vector<4x128xf32>,
    return
  }
  func.func @transform_0(%arg0: i32) -> (i32, i32) {
    %c0_i32 = arith.constant 0 : i32
    %c0_i32_0 = arith.constant 0 : i32
    return %arg0, %c0_i32 : i32, i32
  }
  func.func @transform_1(%arg0: i32) -> (i32, i32) {
    %c0_i32 = arith.constant 0 : i32
    %c0_i32_0 = arith.constant 0 : i32
    %c0_i32_1 = arith.constant 0 : i32
    return %c0_i32, %c0_i32_0 : i32, i32
  }
  func.func @transform_2(%arg0: i32) -> (i32, i32) {
    %c0_i32 = arith.constant 0 : i32
    %c0_i32_0 = arith.constant 0 : i32
    %c0_i32_1 = arith.constant 0 : i32
    return %c0_i32, %c0_i32_0 : i32, i32
  }
  func.func @transform_3(%arg0: i32) -> (i32, i32) {
    %c0_i32 = arith.constant 0 : i32
    %c0_i32_0 = arith.constant 0 : i32
    %c0_i32_1 = arith.constant 0 : i32
    return %c0_i32, %c0_i32_0 : i32, i32
  }
  func.func @transform_4(%arg0: i32) -> (i32, i32) {
    %c0_i32 = arith.constant 0 : i32
    %c0_i32_0 = arith.constant 0 : i32
    %c0_i32_1 = arith.constant 0 : i32
    return %c0_i32, %c0_i32_0 : i32, i32
  }
  func.func @transform_5(%arg0: i32) -> (i32, i32) {
    %c0_i32 = arith.constant 0 : i32
    %c0_i32_0 = arith.constant 0 : i32
    %c0_i32_1 = arith.constant 0 : i32
    return %c0_i32, %c0_i32_0 : i32, i32
  }
  func.func @transform_6(%arg0: i32) -> (i32, i32) {
    %c0_i32 = arith.constant 0 : i32
    %c0_i32_0 = arith.constant 0 : i32
    %c0_i32_1 = arith.constant 0 : i32
    return %c0_i32, %c0_i32_0 : i32, i32
  }
  func.func @transform_7(%arg0: i32) -> (i32, i32) {
    %c0_i32 = arith.constant 0 : i32
    %c0_i32_0 = arith.constant 0 : i32
    return %c0_i32, %arg0 : i32, i32
  }
}

</mosaic_0001>

<llo_original>
// kernel: _actor_forward_impl.1
$region0: #{_actor_forward_impl.1}
  #allocation0 [shape = 'u32[]', space=smem, size = 0x4, offset = 0x4, fixed_abs, tag = 'smem constant byte address 0x4 - core index']
  #allocation1 [shape = 'u32[72,128]{1,0:T(1,128)}', space=vmem, size = 0x9000, scoped, tag = 'internal scratch']
  %s0 = inlined_call_operand.vmem [shape: bf16[128,16], index: 0, kind: input, shape index: {}]
  %s1 = inlined_call_operand.vmem [shape: bf16[64,16], index: 1, kind: input, shape index: {}]
  %s2 = inlined_call_operand.vmem [shape: f32[64,1], index: 2, kind: input, shape index: {}]
  %s3 = inlined_call_operand.vmem [shape: bf16[64,64], index: 3, kind: input, shape index: {}]
  %s4 = inlined_call_operand.vmem [shape: f32[64,1], index: 4, kind: input, shape index: {}]
  %s5 = inlined_call_operand.vmem [shape: bf16[4,64], index: 5, kind: input, shape index: {}]
  %s6 = inlined_call_operand.vmem [shape: f32[4,1], index: 6, kind: input, shape index: {}]
  %s7 = inlined_call_operand.vmem [shape: f32[4,128], index: 7, kind: output, shape index: {}]
  %s8 = sld [smem:[#allocation0]]
  $region38: #{_actor_forward_impl.1} parent=0
    _
  %s10 = ssub.s32 1, %s8
  %s11 = scalar_select 0, %s10, %s8
  // Predicated region
  $region2: #{_actor_forward_impl.1} parent=0 // pred_check
    _
  $region3: #{_actor_forward_impl.1} parent=0 // pred_check_branch
    %13 = sbr.rel (0) target = $region5
  $region4: #{_actor_forward_impl.1} parent=0 // pred_region
    _
  $region5: #{_actor_forward_impl.1} parent=0 // pred_fallthru
    _
  // Predicated region
  $region6: #{_actor_forward_impl.1} parent=0 // pred_check
    _
  $region7: #{_actor_forward_impl.1} parent=0 // pred_check_branch
    %15 = sbr.rel (0) target = $region9
  $region8: #{_actor_forward_impl.1} parent=0 // pred_region
    _
  $region9: #{_actor_forward_impl.1} parent=0 // pred_fallthru
    _
  // Predicated region
  $region10: #{_actor_forward_impl.1} parent=0 // pred_check
    _
  $region11: #{_actor_forward_impl.1} parent=0 // pred_check_branch
    %17 = sbr.rel (0) target = $region13
  $region12: #{_actor_forward_impl.1} parent=0 // pred_region
    _
  $region13: #{_actor_forward_impl.1} parent=0 // pred_fallthru
    _
  // Predicated region
  $region14: #{_actor_forward_impl.1} parent=0 // pred_check
    _
  $region15: #{_actor_forward_impl.1} parent=0 // pred_check_branch
    %19 = sbr.rel (0) target = $region17
  $region16: #{_actor_forward_impl.1} parent=0 // pred_region
    _
  $region17: #{_actor_forward_impl.1} parent=0 // pred_fallthru
    _
  // Predicated region
  $region18: #{_actor_forward_impl.1} parent=0 // pred_check
    _
  $region19: #{_actor_forward_impl.1} parent=0 // pred_check_branch
    %21 = sbr.rel (0) target = $region21
  $region20: #{_actor_forward_impl.1} parent=0 // pred_region
    _
  $region21: #{_actor_forward_impl.1} parent=0 // pred_fallthru
    _
  // Predicated region
  $region22: #{_actor_forward_impl.1} parent=0 // pred_check
    _
  $region23: #{_actor_forward_impl.1} parent=0 // pred_check_branch
    %23 = sbr.rel (0) target = $region25
  $region24: #{_actor_forward_impl.1} parent=0 // pred_region
    _
  $region25: #{_actor_forward_impl.1} parent=0 // pred_fallthru
    _
  // Predicated region
  $region26: #{_actor_forward_impl.1} parent=0 // pred_check
    _
  $region27: #{_actor_forward_impl.1} parent=0 // pred_check_branch
    %25 = sbr.rel (0) target = $region29
  $region28: #{_actor_forward_impl.1} parent=0 // pred_region
    _
  $region29: #{_actor_forward_impl.1} parent=0 // pred_fallthru
    _
  %v27 = vld [vmem:[%s0] sm:$0xf]
  %v28 = vld [vmem:[%s0 + $0x4] sm:$0xf]
  %v29 = vld [vmem:[%s0 + $0x8] sm:$0xf]
  %v30 = vld [vmem:[%s0 + $0xc] sm:$0xf]
  %v31 = vld [vmem:[%s0 + $0x10] sm:$0xf]
  %v32 = vld [vmem:[%s0 + $0x14] sm:$0xf]
  %v33 = vld [vmem:[%s0 + $0x18] sm:$0xf]
  %v34 = vld [vmem:[%s0 + $0x1c] sm:$0xf]
  %v35 = vld [vmem:[%s0 + $0x20] sm:$0xf]
  %v36 = vld [vmem:[%s0 + $0x24] sm:$0xf]
  %v37 = vld [vmem:[%s0 + $0x28] sm:$0xf]
  %v38 = vld [vmem:[%s0 + $0x2c] sm:$0xf]
  %v39 = vld [vmem:[%s0 + $0x30] sm:$0xf]
  %v40 = vld [vmem:[%s0 + $0x34] sm:$0xf]
  %v41 = vld [vmem:[%s0 + $0x38] sm:$0xf]
  %v42 = vld [vmem:[%s0 + $0x3c] sm:$0xf]
  %v43 = vld [vmem:[%s1] sm:$0xf]
  %v44 = vld [vmem:[%s1 + $0x4] sm:$0xf]
  %v45 = vld [vmem:[%s1 + $0x8] sm:$0xf]
  %v46 = vld [vmem:[%s1 + $0xc] sm:$0xf]
  %v47 = vld [vmem:[%s1 + $0x10] sm:$0xf]
  %v48 = vld [vmem:[%s1 + $0x14] sm:$0xf]
  %v49 = vld [vmem:[%s1 + $0x18] sm:$0xf]
  %v50 = vld [vmem:[%s1 + $0x1c] sm:$0xf]
  %v51 = vld [vmem:[%s2] sm:$0xff]
  %v52 = vld [vmem:[%s2 + $0x8] sm:$0xff]
  %v53 = vld [vmem:[%s2 + $0x10] sm:$0xff]
  %v54 = vld [vmem:[%s2 + $0x18] sm:$0xff]
  %v55 = vld [vmem:[%s2 + $0x20] sm:$0xff]
  %v56 = vld [vmem:[%s2 + $0x28] sm:$0xff]
  %v57 = vld [vmem:[%s2 + $0x30] sm:$0xff]
  %v58 = vld [vmem:[%s2 + $0x38] sm:$0xff]
  %60 = vset.pattern.permute.xlu0 0
  %61 = vperm.xlu0 %60, %v51
  %v62 = vpop.permute.xlu0 %61
  %65 = vset.pattern.permute.xlu0 0
  %66 = vperm.xlu0 %65, %v52
  %v67 = vpop.permute.xlu0 %66
  %70 = vset.pattern.permute.xlu0 0
  %71 = vperm.xlu0 %70, %v53
  %v72 = vpop.permute.xlu0 %71
  %75 = vset.pattern.permute.xlu0 0
  %76 = vperm.xlu0 %75, %v54
  %v77 = vpop.permute.xlu0 %76
  %80 = vset.pattern.permute.xlu0 0
  %81 = vperm.xlu0 %80, %v55
  %v82 = vpop.permute.xlu0 %81
  %85 = vset.pattern.permute.xlu0 0
  %86 = vperm.xlu0 %85, %v56
  %v87 = vpop.permute.xlu0 %86
  %90 = vset.pattern.permute.xlu0 0
  %91 = vperm.xlu0 %90, %v57
  %v92 = vpop.permute.xlu0 %91
  %95 = vset.pattern.permute.xlu0 0
  %96 = vperm.xlu0 %95, %v58
  %v97 = vpop.permute.xlu0 %96
  %v107 = vunpack.c.l.b16 %v43
  %v108 = vunpack.c.l.b16 %v44
  %v109 = vunpack.c.l.b16 %v45
  %v110 = vunpack.c.l.b16 %v46
  %v111 = vunpack.c.l.b16 %v47
  %v112 = vunpack.c.l.b16 %v48
  %v113 = vunpack.c.l.b16 %v49
  %v114 = vunpack.c.l.b16 %v50
  %v115 = vpack.c.b16 %v108, %v107
  %v116 = vpack.c.b16 %v110, %v109
  %v117 = vpack.c.b16 %v112, %v111
  %v118 = vpack.c.b16 %v114, %v113
  %v135 = vunpack.c.l.b16 %v27
  %v136 = vunpack.c.l.b16 %v28
  %v137 = vunpack.c.l.b16 %v29
  %v138 = vunpack.c.l.b16 %v30
  %v139 = vunpack.c.l.b16 %v31
  %v140 = vunpack.c.l.b16 %v32
  %v141 = vunpack.c.l.b16 %v33
  %v142 = vunpack.c.l.b16 %v34
  %v143 = vunpack.c.l.b16 %v35
  %v144 = vunpack.c.l.b16 %v36
  %v145 = vunpack.c.l.b16 %v37
  %v146 = vunpack.c.l.b16 %v38
  %v147 = vunpack.c.l.b16 %v39
  %v148 = vunpack.c.l.b16 %v40
  %v149 = vunpack.c.l.b16 %v41
  %v150 = vunpack.c.l.b16 %v42
  %v151 = vpack.c.b16 %v136, %v135
  %v152 = vpack.c.b16 %v138, %v137
  %v153 = vpack.c.b16 %v140, %v139
  %v154 = vpack.c.b16 %v142, %v141
  %v155 = vpack.c.b16 %v144, %v143
  %v156 = vpack.c.b16 %v146, %v145
  %v157 = vpack.c.b16 %v148, %v147
  %v158 = vpack.c.b16 %v150, %v149
  %vm159 = vcmask 130048
  %v161 = vsel %vm159, %v115, 0
  %v164 = vsel %vm159, %v116, 0
  %v167 = vsel %vm159, %v117, 0
  %v170 = vsel %vm159, %v118, 0
  %v173 = vsel %vm159, %v151, 0
  %v176 = vsel %vm159, %v152, 0
  %v179 = vsel %vm159, %v153, 0
  %v182 = vsel %vm159, %v154, 0
  %v185 = vsel %vm159, %v155, 0
  %v188 = vsel %vm159, %v156, 0
  %v191 = vsel %vm159, %v157, 0
  %v194 = vsel %vm159, %v158, 0
  %196 = vmatpush.bf16.xpose.msra.mxu0 %v194
  %197 = vmatpush.bf16.xpose.msra.mxu0 %v191
  %198 = vmatpush.bf16.xpose.msra.mxu0 %v188
  %199 = vmatpush.bf16.xpose.msra.mxu0 %v185
  %200 = vmatpush.bf16.xpose.msra.mxu0 %v182
  %201 = vmatpush.bf16.xpose.msra.mxu0 %v179
  %202 = vmatpush.bf16.xpose.msra.mxu0 %v176
  %203 = vmatpush.bf16.xpose.msra.mxu0 %v173
  %204 = vmatmul.bf16.gmra.mxu0 %v161
  %v205 = vpop.f32.mrf.mxu0
  %v206 = vadd.f32 %v62, %v205
  %v207 = vpop.f32.mrf.mxu0
  %v208 = vadd.f32 %v67, %v207
  %209 = vmatmul.bf16.gmra.mxu0 %v164
  %v210 = vpop.f32.mrf.mxu0
  %v211 = vadd.f32 %v72, %v210
  %v212 = vpop.f32.mrf.mxu0
  %v213 = vadd.f32 %v77, %v212
  %214 = vmatmul.bf16.gmra.mxu0 %v167
  %v215 = vpop.f32.mrf.mxu0
  %v216 = vadd.f32 %v82, %v215
  %v217 = vpop.f32.mrf.mxu0
  %v218 = vadd.f32 %v87, %v217
  %219 = vmatmul.bf16.gmra.mxu0 %v170
  %v220 = vpop.f32.mrf.mxu0
  %v221 = vadd.f32 %v92, %v220
  %v222 = vpop.f32.mrf.mxu0
  %v223 = vadd.f32 %v97, %v222
  %224 = vdwg.mxu0
  %v225 = vmax.f32 %v206, 0.0
  %v226 = vmax.f32 %v208, 0.0
  %v227 = vmax.f32 %v211, 0.0
  %v228 = vmax.f32 %v213, 0.0
  %v229 = vmax.f32 %v216, 0.0
  %v230 = vmax.f32 %v218, 0.0
  %v231 = vmax.f32 %v221, 0.0
  %v232 = vmax.f32 %v223, 0.0
  %v233 = vpack.c.bf16 %v226, %v225
  %v234 = vpack.c.bf16 %v228, %v227
  %v235 = vpack.c.bf16 %v230, %v229
  %v236 = vpack.c.bf16 %v232, %v231
  %v237 = vld [vmem:[%s3] sm:$0xf]
  %v238 = vld [vmem:[%s3 + $0x4] sm:$0xf]
  %v239 = vld [vmem:[%s3 + $0x8] sm:$0xf]
  %v240 = vld [vmem:[%s3 + $0xc] sm:$0xf]
  %v241 = vld [vmem:[%s3 + $0x10] sm:$0xf]
  %v242 = vld [vmem:[%s3 + $0x14] sm:$0xf]
  %v243 = vld [vmem:[%s3 + $0x18] sm:$0xf]
  %v244 = vld [vmem:[%s3 + $0x1c] sm:$0xf]
  %v245 = vld [vmem:[%s4] sm:$0xff]
  %v246 = vld [vmem:[%s4 + $0x8] sm:$0xff]
  %v247 = vld [vmem:[%s4 + $0x10] sm:$0xff]
  %v248 = vld [vmem:[%s4 + $0x18] sm:$0xff]
  %v249 = vld [vmem:[%s4 + $0x20] sm:$0xff]
  %v250 = vld [vmem:[%s4 + $0x28] sm:$0xff]
  %v251 = vld [vmem:[%s4 + $0x30] sm:$0xff]
  %v252 = vld [vmem:[%s4 + $0x38] sm:$0xff]
  %254 = vset.pattern.permute.xlu0 0
  %255 = vperm.xlu0 %254, %v245
  %v256 = vpop.permute.xlu0 %255
  %259 = vset.pattern.permute.xlu0 0
  %260 = vperm.xlu0 %259, %v246
  %v261 = vpop.permute.xlu0 %260
  %264 = vset.pattern.permute.xlu0 0
  %265 = vperm.xlu0 %264, %v247
  %v266 = vpop.permute.xlu0 %265
  %269 = vset.pattern.permute.xlu0 0
  %270 = vperm.xlu0 %269, %v248
  %v271 = vpop.permute.xlu0 %270
  %274 = vset.pattern.permute.xlu0 0
  %275 = vperm.xlu0 %274, %v249
  %v276 = vpop.permute.xlu0 %275
  %279 = vset.pattern.permute.xlu0 0
  %280 = vperm.xlu0 %279, %v250
  %v281 = vpop.permute.xlu0 %280
  %284 = vset.pattern.permute.xlu0 0
  %285 = vperm.xlu0 %284, %v251
  %v286 = vpop.permute.xlu0 %285
  %289 = vset.pattern.permute.xlu0 0
  %290 = vperm.xlu0 %289, %v252
  %v291 = vpop.permute.xlu0 %290
  %v301 = vunpack.c.l.b16 %v237
  %v302 = vunpack.c.l.b16 %v238
  %v303 = vunpack.c.l.b16 %v239
  %v304 = vunpack.c.l.b16 %v240
  %v305 = vunpack.c.l.b16 %v241
  %v306 = vunpack.c.l.b16 %v242
  %v307 = vunpack.c.l.b16 %v243
  %v308 = vunpack.c.l.b16 %v244
  %v309 = vpack.c.b16 %v302, %v301
  %v310 = vpack.c.b16 %v304, %v303
  %v311 = vpack.c.b16 %v306, %v305
  %v312 = vpack.c.b16 %v308, %v307
  %vm313 = vcmask 523264
  %v315 = vsel %vm313, %v309, 0
  %v318 = vsel %vm313, %v310, 0
  %v321 = vsel %vm313, %v311, 0
  %v324 = vsel %vm313, %v312, 0
  %326 = vmatpush.bf16.msra.mxu0 0
  %327 = vmatpush.bf16.msra.mxu0 0
  %328 = vmatpush.bf16.msra.mxu0 0
  %329 = vmatpush.bf16.msra.mxu0 0
  %330 = vmatpush.bf16.msra.mxu0 %v236
  %331 = vmatpush.bf16.msra.mxu0 %v235
  %332 = vmatpush.bf16.msra.mxu0 %v234
  %333 = vmatpush.bf16.msra.mxu0 %v233
  %334 = vmatmul.bf16.gmra.mxu0 %v315
  %v335 = vpop.f32.mrf.mxu0
  %v336 = vadd.f32 %v256, %v335
  %v337 = vpop.f32.mrf.mxu0
  %v338 = vadd.f32 %v261, %v337
  %339 = vmatmul.bf16.gmra.mxu0 %v318
  %v340 = vpop.f32.mrf.mxu0
  %v341 = vadd.f32 %v266, %v340
  %v342 = vpop.f32.mrf.mxu0
  %v343 = vadd.f32 %v271, %v342
  %344 = vmatmul.bf16.gmra.mxu0 %v321
  %v345 = vpop.f32.mrf.mxu0
  %v346 = vadd.f32 %v276, %v345
  %v347 = vpop.f32.mrf.mxu0
  %v348 = vadd.f32 %v281, %v347
  %349 = vmatmul.bf16.gmra.mxu0 %v324
  %v350 = vpop.f32.mrf.mxu0
  %v351 = vadd.f32 %v286, %v350
  %v352 = vpop.f32.mrf.mxu0
  %v353 = vadd.f32 %v291, %v352
  %354 = vdwg.mxu0
  %v355 = vmax.f32 %v336, 0.0
  %v356 = vmax.f32 %v338, 0.0
  %v357 = vmax.f32 %v341, 0.0
  %v358 = vmax.f32 %v343, 0.0
  %v359 = vmax.f32 %v346, 0.0
  %v360 = vmax.f32 %v348, 0.0
  %v361 = vmax.f32 %v351, 0.0
  %v362 = vmax.f32 %v353, 0.0
  %v363 = vpack.c.bf16 %v356, %v355
  %v364 = vpack.c.bf16 %v358, %v357
  %v365 = vpack.c.bf16 %v360, %v359
  %v366 = vpack.c.bf16 %v362, %v361
  %v367 = vld [vmem:[%s5] sm:$0x3]
  %v368 = vld [vmem:[%s6] sm:$0xf]
  %370 = vset.pattern.permute.xlu0 0
  %371 = vperm.xlu0 %370, %v368
  %v372 = vpop.permute.xlu0 %371
  %v375 = vsel %vm313, %v367, 0
  %377 = vmatpush.bf16.msra.mxu0 0
  %378 = vmatpush.bf16.msra.mxu0 0
  %379 = vmatpush.bf16.msra.mxu0 0
  %380 = vmatpush.bf16.msra.mxu0 0
  %381 = vmatpush.bf16.msra.mxu0 %v366
  %382 = vmatpush.bf16.msra.mxu0 %v365
  %383 = vmatpush.bf16.msra.mxu0 %v364
  %384 = vmatpush.bf16.msra.mxu0 %v363
  %385 = vmatmul.bf16.gmra.mxu0 %v375
  %v386 = vpop.f32.mrf.mxu0
  %v387 = vadd.f32 %v372, %v386
  %v388 = vpop.f32.mrf.mxu0
  %389 = vdwg.mxu0
  %390 = vst [vmem:[%s7] sm:$0xf] %v387
  // Predicated region
  $region30: #{_actor_forward_impl.1} parent=0 // pred_check
    _
  $region31: #{_actor_forward_impl.1} parent=0 // pred_check_branch
    %392 = sbr.rel (0) target = $region33
  $region32: #{_actor_forward_impl.1} parent=0 // pred_region
    _
  $region33: #{_actor_forward_impl.1} parent=0 // pred_fallthru
    _
  // Predicated region
  $region34: #{_actor_forward_impl.1} parent=0 // pred_check
    _
  $region35: #{_actor_forward_impl.1} parent=0 // pred_check_branch
    %394 = sbr.rel (0) target = $region37
  $region36: #{_actor_forward_impl.1} parent=0 // pred_region
    _
  $region37: #{_actor_forward_impl.1} parent=0 // pred_fallthru
    _

</llo_original>
